<compile_context>
chip_gen: v7x
topology: tpu7x:2x2x1
jax: 0.10.0
libtpu: 0.0.40
codegen_flags: <defaults>
</compile_context>

<pallas_src>
import functools

import jax
import jax.numpy as jnp
import numpy as np
from jax import lax
from jax.experimental import pallas as pl
from jax.experimental.pallas import tpu as pltpu


# Below v7x's 64 MiB physical VMEM, above the 16/32 MiB default scoped limit.
_VMEM_LIMIT = 48 * 1024 * 1024


def _pick_tile(dim, candidates):
    """Largest candidate that evenly divides `dim`, else the full dim."""
    for c in candidates:
        if dim >= c and dim % c == 0:
            return c
    return dim


# ----------------------------------------------------------------------------
# Tiled GEMM + bias:  y = x @ W^T + b.
# W stays in torch (N, K) layout; the transposed contraction is expressed with
# dot_general so no weight transpose is ever materialized in HBM or VMEM.
# ----------------------------------------------------------------------------
def _matmul_bias_kernel(x_ref, w_ref, b_ref, o_ref, acc_ref):
    @pl.when(pl.program_id(2) == 0)
    def _init():
        acc_ref[...] = jnp.zeros_like(acc_ref)

    acc_ref[...] += lax.dot_general(
        x_ref[...], w_ref[...],
        dimension_numbers=(((1,), (1,)), ((), ())),
        preferred_element_type=jnp.float32)

    @pl.when(pl.program_id(2) == pl.num_programs(2) - 1)
    def _finalize():
        o_ref[...] = (acc_ref[...] + b_ref[...].astype(jnp.float32)).astype(o_ref.dtype)


def linear(x2d, w, b, *, tiles=((512, 256, 128), (512, 256, 128), (512, 256, 128))):
    """x2d: (M, K), w: (N, K) torch-style weight, b: (N,)  ->  (M, N)."""
    M, K = x2d.shape
    N = w.shape[0]
    tm = _pick_tile(M, tiles[0])
    tn = _pick_tile(N, tiles[1])
    tk = _pick_tile(K, tiles[2])
    grid = (M // tm, N // tn, K // tk)
    return pl.pallas_call(
        _matmul_bias_kernel,
        out_shape=jax.ShapeDtypeStruct((M, N), x2d.dtype),
        grid_spec=pltpu.PrefetchScalarGridSpec(
            num_scalar_prefetch=0,
            grid=grid,
            in_specs=[
                pl.BlockSpec((tm, tk), lambda i, j, k: (i, k)),
                pl.BlockSpec((tn, tk), lambda i, j, k: (j, k)),
                pl.BlockSpec((1, tn), lambda i, j, k: (0, j)),
            ],
            out_specs=pl.BlockSpec((tm, tn), lambda i, j, k: (i, j)),
            scratch_shapes=[pltpu.VMEM((tm, tn), jnp.float32)],
        ),
        compiler_params=pltpu.CompilerParams(
            dimension_semantics=("parallel", "parallel", "arbitrary"),
            vmem_limit_bytes=_VMEM_LIMIT),
    )(x2d, w, b.reshape(1, N))


# ----------------------------------------------------------------------------
# Flash-style causal attention over the fused (B, T, 3, H, D) QKV tensor.
# grid = (B, head_groups, q_blocks, kv_blocks); online softmax over kv blocks.
# ----------------------------------------------------------------------------
def _flash_attn_kernel(q_ref, k_ref, v_ref, o_ref,
                       qs_ref, m_ref, l_ref, acc_ref,
                       *, scale, min_val, tq, tk, hb):
    qi = pl.program_id(2)
    ki = pl.program_id(3)
    nk = pl.num_programs(3)

    @pl.when(ki == 0)
    def _init():
        # The q block is resident across the whole KV axis: pre-scale it once
        # and stash it head-major so the inner KV loop reads contiguous tiles.
        for h in range(hb):
            qs_ref[h] = (q_ref[:, h, :] * scale).astype(qs_ref.dtype)
        m_ref[...] = jnp.full_like(m_ref, min_val)
        l_ref[...] = jnp.zeros_like(l_ref)
        acc_ref[...] = jnp.zeros_like(acc_ref)

    # Causal: skip KV blocks that lie entirely above the diagonal.
    @pl.when(ki * tk <= qi * tq + (tq - 1))
    def _compute():
        # In-kernel causal mask -> no (T, S) mask DMA from HBM.
        q_pos = qi * tq + lax.broadcasted_iota(jnp.int32, (tq, tk), 0)
        k_pos = ki * tk + lax.broadcasted_iota(jnp.int32, (tq, tk), 1)
        visible = q_pos >= k_pos

        for h in range(hb):                                 # static unroll over heads
            q_h = qs_ref[h]                                 # (tq, D), pre-scaled
            k_h = k_ref[:, h, :]                            # (tk, D)
            v_h = v_ref[:, h, :]                            # (tk, D)
            # q @ k^T without forming k.T (transposed contraction).
            s = lax.dot_general(
                q_h, k_h, dimension_numbers=(((1,), (1,)), ((), ())),
                preferred_element_type=jnp.float32)          # (tq, tk)
            s = jnp.where(visible, s, min_val)

            m_prev = m_ref[h]
            m_new = jnp.maximum(m_prev, jnp.max(s, axis=-1, keepdims=True))
            alpha = jnp.exp(m_prev - m_new)
            p = jnp.exp(s - m_new)
            l_ref[h] = alpha * l_ref[h] + jnp.sum(p, axis=-1, keepdims=True)
            acc_ref[h] = alpha * acc_ref[h] + lax.dot_general(
                p.astype(v_h.dtype), v_h,
                dimension_numbers=(((1,), (0,)), ((), ())),
                preferred_element_type=jnp.float32)
            m_ref[h] = m_new

    # TODO(synk): attention_dropout skipped — eval path (training=False) is identity.
    @pl.when(ki == nk - 1)
    def _finalize():
        l = l_ref[...]
        r = pl.reciprocal(l, approx=True)                   # EUP slot
        r = r * (2.0 - l * r)                               # one Newton step -> f32 accuracy
        for h in range(hb):
            o_ref[:, h, :] = (acc_ref[h] * r[h]).astype(o_ref.dtype)


def flash_attention(qkv, scaling, *, q_block=None, kv_block=None):
    """qkv: (B, T, 3, H, D) fused projections -> (B, T, H, D) causal attention."""
    B, T, _, H, D = qkv.shape
    # Heads per grid step: keep the head-group size 8 (BlockSpec second-minor
    # constraint) or the full head count, so several heads share one DMA.
    hb = 8 if (H >= 8 and H % 8 == 0) else H
    tq = q_block if q_block is not None else _pick_tile(T, (256, 128))
    tk = kv_block if kv_block is not None else _pick_tile(T, (256, 128))
    assert T % tq == 0 and T % tk == 0, "q/kv block must divide the sequence length"
    min_val = float(jnp.finfo(jnp.float32).min)
    grid = (B, H // hb, T // tq, T // tk)
    kern = functools.partial(_flash_attn_kernel, scale=scaling,
                             min_val=min_val, tq=tq, tk=tk, hb=hb)
    return pl.pallas_call(
        kern,
        out_shape=jax.ShapeDtypeStruct((B, T, H, D), qkv.dtype),
        grid_spec=pltpu.PrefetchScalarGridSpec(
            num_scalar_prefetch=0,
            grid=grid,
            in_specs=[
                pl.BlockSpec((None, tq, None, hb, D),
                             lambda b, h, qi, ki: (b, qi, 0, h, 0)),   # q slice
                pl.BlockSpec((None, tk, None, hb, D),
                             lambda b, h, qi, ki: (b, ki, 1, h, 0)),   # k slice
                pl.BlockSpec((None, tk, None, hb, D),
                             lambda b, h, qi, ki: (b, ki, 2, h, 0)),   # v slice
            ],
            out_specs=pl.BlockSpec((None, tq, hb, D),
                                   lambda b, h, qi, ki: (b, qi, h, 0)),
            scratch_shapes=[
                pltpu.VMEM((hb, tq, D), qkv.dtype),     # pre-scaled q, head-major
                pltpu.VMEM((hb, tq, 1), jnp.float32),   # running max m
                pltpu.VMEM((hb, tq, 1), jnp.float32),   # running sum l
                pltpu.VMEM((hb, tq, D), jnp.float32),   # output accumulator
            ],
        ),
        compiler_params=pltpu.CompilerParams(
            dimension_semantics=("parallel", "parallel", "parallel", "arbitrary"),
            vmem_limit_bytes=_VMEM_LIMIT),
    )(qkv, qkv, qkv)


# ----------------------------------------------------------------------------
# Full OptFlashAttention2 forward (causal self-attention, eval path)
# ----------------------------------------------------------------------------
def opt_attention_forward(hidden_states, params, num_heads, attention_mask=None,
                          *, attn_blocks=(None, None), mm_tiles=None):
    """Returns (attn_output, attn_weights=None, past_key_value=None).

    TODO(synk): padding attention_mask, KV-cache (past_key_value), cross-attention
    and kv_bit pseudo-quantization paths are not implemented (causal eval path only).
    """
    B, T, E = hidden_states.shape
    H = num_heads
    D = E // H
    scaling = D ** -0.5

    x2d = hidden_states.reshape(B * T, E)

    # Fused QKV projection: one GEMM instead of three (x read from HBM once).
    wqkv = jnp.concatenate([params["q_w"], params["k_w"], params["v_w"]], axis=0)
    bqkv = jnp.concatenate([params["q_b"], params["k_b"], params["v_b"]], axis=0)

    lin_kwargs = {} if mm_tiles is None else {"tiles": mm_tiles}
    qkv = linear(x2d, wqkv, bqkv, **lin_kwargs)          # (B*T, 3E)

    # Pure view (no data movement): (B*T, 3E) -> (B, T, 3, H, D).
    qkv5d = qkv.reshape(B, T, 3, H, D)

    attn = flash_attention(qkv5d, scaling,
                           q_block=attn_blocks[0], kv_block=attn_blocks[1])
    attn2d = attn.reshape(B * T, E)                      # free view (B,T,H,D) == (B,T,E)

    out = linear(attn2d, params["o_w"], params["o_b"], **lin_kwargs)
    return out.reshape(B, T, E), None, None


# ----------------------------------------------------------------------------
# Pure-JAX reference for correctness checking
# ----------------------------------------------------------------------------
def reference_forward(hidden_states, params, num_heads):
    B, T, E = hidden_states.shape
    H, D = num_heads, E // num_heads
    scaling = D ** -0.5
    x = hidden_states.reshape(B * T, E)
    q = (x @ params["q_w"].T + params["q_b"]) * scaling
    k = x @ params["k_w"].T + params["k_b"]
    v = x @ params["v_w"].T + params["v_b"]

    def sh(t):
        return t.reshape(B, T, H, D).transpose(0, 2, 1, 3)

    q, k, v = sh(q), sh(k), sh(v)
    s = jnp.einsum("bhtd,bhsd->bhts", q, k)
    causal = jnp.arange(T)[:, None] >= jnp.arange(T)[None, :]
    s = jnp.where(causal, s, jnp.finfo(jnp.float32).min)
    p = jax.nn.softmax(s, axis=-1)
    o = jnp.einsum("bhts,bhsd->bhtd", p, v)
    o = o.transpose(0, 2, 1, 3).reshape(B * T, E)
    return (o @ params["o_w"].T + params["o_b"]).reshape(B, T, E)


def _make_params(key, E):
    ks = jax.random.split(key, 8)
    init = lambda k, shape: jax.random.normal(k, shape, jnp.float32) * 0.02
    return {
        "q_w": init(ks[0], (E, E)), "q_b": init(ks[1], (E,)),
        "k_w": init(ks[2], (E, E)), "k_b": init(ks[3], (E,)),
        "v_w": init(ks[4], (E, E)), "v_b": init(ks[5], (E,)),
        "o_w": init(ks[6], (E, E)), "o_b": init(ks[7], (E,)),
    }


if __name__ == "__main__":
    key = jax.random.PRNGKey(0)
    k1, k2, k3, k4 = jax.random.split(key, 4)

    # Config 1: tiny single-block case (B=2, T=8, E=64, H=4, D=16).
    B, T, E, H = 2, 8, 64, 4
    params = _make_params(k1, E)
    x = jax.random.normal(k2, (B, T, E), jnp.float32)
    out, _, _ = opt_attention_forward(x, params, H)
    out = jax.block_until_ready(out)
    ref = reference_forward(x, params, H)
    np.testing.assert_allclose(np.asarray(out), np.asarray(ref), rtol=2e-5, atol=2e-5)

    # Config 2: exercises multi-block online softmax, causal KV-block skipping
    # and the K-axis GEMM accumulator (B=2, T=32, E=256, H=4, D=64).
    B, T, E, H = 2, 32, 256, 4
    params = _make_params(k3, E)
    x = jax.random.normal(k4, (B, T, E), jnp.float32)
    out, _, _ = opt_attention_forward(
        x, params, H,
        attn_blocks=(8, 8),
        mm_tiles=((64,), (256, 128), (128,)))
    out = jax.block_until_ready(out)
    ref = reference_forward(x, params, H)
    np.testing.assert_allclose(np.asarray(out), np.asarray(ref), rtol=2e-5, atol=2e-5)

    print("KERNEL_OK")
</pallas_src>

<mosaic_0001>
module attributes {stable_mosaic.version = 11 : i64} {
  func.func @_matmul_bias_kernel(%arg0: i32, %arg1: i32, %arg2: i32, %arg3: memref<16x64xf32, #tpu.memory_space<vmem>>, %arg4: memref<192x64xf32, #tpu.memory_space<vmem>>, %arg5: memref<1x192xf32, #tpu.memory_space<vmem>>, %arg6: memref<16x192xf32, #tpu.memory_space<vmem>>, %arg7: memref<16x192xf32, #tpu.memory_space<vmem>>) attributes {dimension_semantics = [#tpu.dimension_semantics<parallel>, #tpu.dimension_semantics<parallel>, #tpu.dimension_semantics<arbitrary>], iteration_bounds = array<i64: 1, 1, 1>, scalar_prefetch = 0 : i64, scratch_operands = 1 : i64, tpu.core_type = #tpu.core_type<tc>, window_params = [{transform_indices = @transform_0, window_bounds = array<i64: 16, 64>}, {transform_indices = @transform_1, window_bounds = array<i64: 192, 64>}, {transform_indices = @transform_2, window_bounds = array<i64: 1, 192>}, {transform_indices = @transform_3, window_bounds = array<i64: 16, 192>}]} {
    %c0_i32 = arith.constant 0 : i32
    %0 = arith.cmpi eq, %arg2, %c0_i32 : i32
    %1 = arith.extui %0 : i1 to i32
    %c0_i32_0 = arith.constant 0 : i32
    %2 = arith.cmpi ne, %1, %c0_i32_0 : i32
    scf.if %2 {
      %cst_10 = arith.constant 0.000000e+00 : f32
      %12 = vector.broadcast %cst_10 : f32 to vector<16x192xf32>
      %c0_11 = arith.constant 0 : index
      %c0_12 = arith.constant 0 : index
      %13 = vector.load %arg7[%c0_11, %c0_12] : memref<16x192xf32, #tpu.memory_space<vmem>>, vector<16x192xf32>
      tpu.vector_store %arg7[%c0_11, %c0_12], %12 {strides = array<i32>} : memref<16x192xf32, #tpu.memory_space<vmem>>, vector<16x192xf32>,
    } else {
    }
    %c0 = arith.constant 0 : index
    %c0_1 = arith.constant 0 : index
    %3 = vector.load %arg7[%c0, %c0_1] : memref<16x192xf32, #tpu.memory_space<vmem>>, vector<16x192xf32>
    %c0_2 = arith.constant 0 : index
    %c0_3 = arith.constant 0 : index
    %4 = vector.load %arg3[%c0_2, %c0_3] : memref<16x64xf32, #tpu.memory_space<vmem>>, vector<16x64xf32>
    %c0_4 = arith.constant 0 : index
    %c0_5 = arith.constant 0 : index
    %5 = vector.load %arg4[%c0_4, %c0_5] : memref<192x64xf32, #tpu.memory_space<vmem>>, vector<192x64xf32>
    %cst = arith.constant dense<0.000000e+00> : vector<16x192xf32>
    %6 = tpu.matmul %4, %5, %cst {dimension_numbers = #tpu.dot_dimension_numbers<[1], [1], [0], [0], [0, 0, 1, 0], [], []>} : vector<16x64xf32>, vector<192x64xf32>, vector<16x192xf32> -> vector<16x192xf32>
    %7 = arith.addf %3, %6 : vector<16x192xf32>
    %c0_6 = arith.constant 0 : index
    %c0_7 = arith.constant 0 : index
    %8 = vector.load %arg7[%c0_6, %c0_7] : memref<16x192xf32, #tpu.memory_space<vmem>>, vector<16x192xf32>
    tpu.vector_store %arg7[%c0_6, %c0_7], %7 {strides = array<i32>} : memref<16x192xf32, #tpu.memory_space<vmem>>, vector<16x192xf32>,
    %c0_i32_8 = arith.constant 0 : i32
    %9 = arith.cmpi eq, %arg2, %c0_i32_8 : i32
    %10 = arith.extui %9 : i1 to i32
    %c0_i32_9 = arith.constant 0 : i32
    %11 = arith.cmpi ne, %10, %c0_i32_9 : i32
    scf.if %11 {
      %c0_10 = arith.constant 0 : index
      %c0_11 = arith.constant 0 : index
      %12 = vector.load %arg7[%c0_10, %c0_11] : memref<16x192xf32, #tpu.memory_space<vmem>>, vector<16x192xf32>
      %c0_12 = arith.constant 0 : index
      %c0_13 = arith.constant 0 : index
      %13 = vector.load %arg5[%c0_12, %c0_13] : memref<1x192xf32, #tpu.memory_space<vmem>>, vector<1x192xf32>
      %14 = vector.broadcast %13 : vector<1x192xf32> to vector<16x192xf32>
      %15 = arith.addf %12, %14 : vector<16x192xf32>
      %c0_14 = arith.constant 0 : index
      %c0_15 = arith.constant 0 : index
      %16 = vector.load %arg6[%c0_14, %c0_15] : memref<16x192xf32, #tpu.memory_space<vmem>>, vector<16x192xf32>
      tpu.vector_store %arg6[%c0_14, %c0_15], %15 {strides = array<i32>} : memref<16x192xf32, #tpu.memory_space<vmem>>, vector<16x192xf32>,
    } else {
    }
    return
  }
  func.func @transform_0(%arg0: i32, %arg1: i32, %arg2: i32) -> (i32, i32) {
    %c0_i32 = arith.constant 0 : i32
    return %arg0, %arg2 : i32, i32
  }
  func.func @transform_1(%arg0: i32, %arg1: i32, %arg2: i32) -> (i32, i32) {
    %c0_i32 = arith.constant 0 : i32
    return %arg1, %arg2 : i32, i32
  }
  func.func @transform_2(%arg0: i32, %arg1: i32, %arg2: i32) -> (i32, i32) {
    %c0_i32 = arith.constant 0 : i32
    %c0_i32_0 = arith.constant 0 : i32
    return %c0_i32, %arg1 : i32, i32
  }
  func.func @transform_3(%arg0: i32, %arg1: i32, %arg2: i32) -> (i32, i32) {
    %c0_i32 = arith.constant 0 : i32
    return %arg0, %arg1 : i32, i32
  }
}

</mosaic_0001>

<llo_original>
// kernel: tpu_custom_call.1
$region0: #{tpu_custom_call.1}
  #allocation0 [shape = 'u32[]', space=smem, size = 0x4, offset = 0x4, fixed_abs, tag = 'smem constant byte address 0x4 - core index']
  #allocation1 [shape = 'u32[144,128]{1,0:T(1,128)}', space=vmem, size = 0x12000, scoped, tag = 'internal scratch']
  #allocation2 [shape = 'f32[16,192]{1,0:T(8,128)}', space=vmem, size = 0x4000, scoped, tag = 'scratch operand']
  %s0 = inlined_call_operand.vmem [shape: f32[16,64], index: 0, kind: input, shape index: {}]
  %s1 = inlined_call_operand.vmem [shape: f32[192,64], index: 1, kind: input, shape index: {}]
  %s2 = inlined_call_operand.vmem [shape: f32[1,192], index: 2, kind: input, shape index: {}]
  %s3 = inlined_call_operand.hbm [shape: f32[16,192], index: 3, kind: output, shape index: {}]
  %s4 = sld [smem:[#allocation0]]
  $region30: #{tpu_custom_call.1} parent=0
    _
  %s6 = ssub.s32 1, %s4
  %s7 = scalar_select 0, %s6, %s4
  $region1: #{tpu_custom_call.1} parent=0
    #allocation3 [shape = 'u8[16384]{0}', space=vmem, size = 0x4000, scoped, tag = 'output window, operand 0, single buffered']
    #allocation4 [shape = 's32[1]{0}', space=sflag, size = 0x4, scoped, tag = 'scoped memory for tpu_custom_call.1']
    %8 = vsyncpa [#allocation4], 0
    // Predicated region
    $region2: #{tpu_custom_call.1} parent=1 // pred_check
      _
    $region3: #{tpu_custom_call.1} parent=1 // pred_check_branch
      %10 = sbr.rel (0) target = $region5
    $region4: #{tpu_custom_call.1} parent=1 // pred_region
      _
    $region5: #{tpu_custom_call.1} parent=1 // pred_fallthru
      _
    // Predicated region
    $region6: #{tpu_custom_call.1} parent=1 // pred_check
      _
    $region7: #{tpu_custom_call.1} parent=1 // pred_check_branch
      %12 = sbr.rel (0) target = $region9
    $region8: #{tpu_custom_call.1} parent=1 // pred_region
      _
    $region9: #{tpu_custom_call.1} parent=1 // pred_fallthru
      _
    // Predicated region
    $region10: #{tpu_custom_call.1} parent=1 // pred_check
      _
    $region11: #{tpu_custom_call.1} parent=1 // pred_check_branch
      %14 = sbr.rel (0) target = $region13
    $region12: #{tpu_custom_call.1} parent=1 // pred_region
      _
    $region13: #{tpu_custom_call.1} parent=1 // pred_fallthru
      _
    %p15 = scmp.eq.s32.totalorder 0, 0
    // Predicated region
    $region14: #{tpu_custom_call.1} parent=1 // pred_check
      %p16 = pneg %p15
    $region15: #{tpu_custom_call.1} parent=1 // pred_check_branch
      %18 = sbr.rel (%p16) target = $region17
    $region16: #{tpu_custom_call.1} parent=1 // pred_region
      %19 = vst [vmem:[#allocation2] sm:$0xff] 0.0
      %vm20 = vcmask 523264
      %21 = vst.msk [vmem:[#allocation2 + $0x8] sm:$0xff] %vm20, 0.0
      %22 = vst [vmem:[#allocation2 + $0x10] sm:$0xff] 0.0
      %23 = vst.msk [vmem:[#allocation2 + $0x18] sm:$0xff] %vm20, 0.0
    $region17: #{tpu_custom_call.1} parent=1 // pred_fallthru
      _
    %v24 = vld [vmem:[#allocation2] sm:$0xff]
    %v25 = vld [vmem:[#allocation2 + $0x8] sm:$0xff]
    %v26 = vld [vmem:[#allocation2 + $0x10] sm:$0xff]
    %v27 = vld [vmem:[#allocation2 + $0x18] sm:$0xff]
    %v28 = vld [vmem:[%s0] sm:$0xff]
    %v29 = vld [vmem:[%s0 + $0x8] sm:$0xff]
    %v30 = vld [vmem:[%s1] sm:$0xff]
    %v31 = vld [vmem:[%s1 + $0x8] sm:$0xff]
    %v32 = vld [vmem:[%s1 + $0x10] sm:$0xff]
    %v33 = vld [vmem:[%s1 + $0x18] sm:$0xff]
    %v34 = vld [vmem:[%s1 + $0x20] sm:$0xff]
    %v35 = vld [vmem:[%s1 + $0x28] sm:$0xff]
    %v36 = vld [vmem:[%s1 + $0x30] sm:$0xff]
    %v37 = vld [vmem:[%s1 + $0x38] sm:$0xff]
    %v38 = vld [vmem:[%s1 + $0x40] sm:$0xff]
    %v39 = vld [vmem:[%s1 + $0x48] sm:$0xff]
    %v40 = vld [vmem:[%s1 + $0x50] sm:$0xff]
    %v41 = vld [vmem:[%s1 + $0x58] sm:$0xff]
    %v42 = vld [vmem:[%s1 + $0x60] sm:$0xff]
    %v43 = vld [vmem:[%s1 + $0x68] sm:$0xff]
    %v44 = vld [vmem:[%s1 + $0x70] sm:$0xff]
    %v45 = vld [vmem:[%s1 + $0x78] sm:$0xff]
    %v46 = vld [vmem:[%s1 + $0x80] sm:$0xff]
    %v47 = vld [vmem:[%s1 + $0x88] sm:$0xff]
    %v48 = vld [vmem:[%s1 + $0x90] sm:$0xff]
    %v49 = vld [vmem:[%s1 + $0x98] sm:$0xff]
    %v50 = vld [vmem:[%s1 + $0xa0] sm:$0xff]
    %v51 = vld [vmem:[%s1 + $0xa8] sm:$0xff]
    %v52 = vld [vmem:[%s1 + $0xb0] sm:$0xff]
    %v53 = vld [vmem:[%s1 + $0xb8] sm:$0xff]
    %vm54 = vcmask 523264
    %v56 = vsel %vm54, %v28, 0
    %v59 = vsel %vm54, %v29, 0
    %v62 = vsel %vm54, %v30, 0
    %v65 = vsel %vm54, %v31, 0
    %v68 = vsel %vm54, %v32, 0
    %v71 = vsel %vm54, %v33, 0
    %v74 = vsel %vm54, %v34, 0
    %v77 = vsel %vm54, %v35, 0
    %v80 = vsel %vm54, %v36, 0
    %v83 = vsel %vm54, %v37, 0
    %v86 = vsel %vm54, %v38, 0
    %v89 = vsel %vm54, %v39, 0
    %v92 = vsel %vm54, %v40, 0
    %v95 = vsel %vm54, %v41, 0
    %v98 = vsel %vm54, %v42, 0
    %v101 = vsel %vm54, %v43, 0
    %v104 = vsel %vm54, %v44, 0
    %v107 = vsel %vm54, %v45, 0
    %v110 = vsel %vm54, %v46, 0
    %v113 = vsel %vm54, %v47, 0
    %v116 = vsel %vm54, %v48, 0
    %v119 = vsel %vm54, %v49, 0
    %v122 = vsel %vm54, %v50, 0
    %v125 = vsel %vm54, %v51, 0
    %v128 = vsel %vm54, %v52, 0
    %v131 = vsel %vm54, %v53, 0
    %133 = vmatprep.subr.mxu0 0.0
    %134 = vmatpush1.xpose.msra.mxu0 %v62
    %135 = vmatprep.subr.mxu0 0.0
    %136 = vmatpush1.xpose.msra.mxu0 %v65
    %137 = vmatprep.subr.mxu0 0.0
    %138 = vmatpush1.xpose.msra.mxu0 %v68
    %139 = vmatprep.subr.mxu0 0.0
    %140 = vmatpush1.xpose.msra.mxu0 %v71
    %141 = vmatprep.subr.mxu0 0.0
    %142 = vmatpush1.xpose.msra.mxu0 %v74
    %143 = vmatprep.subr.mxu0 0.0
    %144 = vmatpush1.xpose.msra.mxu0 %v77
    %145 = vmatprep.subr.mxu0 0.0
    %146 = vmatpush1.xpose.msra.mxu0 %v80
    %147 = vmatprep.subr.mxu0 0.0
    %148 = vmatpush1.xpose.msra.mxu0 %v83
    %149 = vmatprep.subr.mxu0 0.0
    %150 = vmatpush1.xpose.msra.mxu0 %v86
    %151 = vmatprep.subr.mxu0 0.0
    %152 = vmatpush1.xpose.msra.mxu0 %v89
    %153 = vmatprep.subr.mxu0 0.0
    %154 = vmatpush1.xpose.msra.mxu0 %v92
    %155 = vmatprep.subr.mxu0 0.0
    %156 = vmatpush1.xpose.msra.mxu0 %v95
    %157 = vmatprep.subr.mxu0 0.0
    %158 = vmatpush1.xpose.msra.mxu0 %v98
    %159 = vmatprep.subr.mxu0 0.0
    %160 = vmatpush1.xpose.msra.mxu0 %v101
    %161 = vmatprep.subr.mxu0 0.0
    %162 = vmatpush1.xpose.msra.mxu0 %v104
    %163 = vmatprep.subr.mxu0 0.0
    %164 = vmatpush1.xpose.msra.mxu0 %v107
    %165 = vmatprep.subr.mxu0 0.0
    %166 = vmatpush1.xpose.msra.mxu0 %v110
    %167 = vmatprep.subr.mxu0 0.0
    %168 = vmatpush1.xpose.msra.mxu0 %v113
    %169 = vmatprep.subr.mxu0 0.0
    %170 = vmatpush1.xpose.msra.mxu0 %v116
    %171 = vmatprep.subr.mxu0 0.0
    %172 = vmatpush1.xpose.msra.mxu0 %v119
    %173 = vmatprep.subr.mxu0 0.0
    %174 = vmatpush1.xpose.msra.mxu0 %v122
    %175 = vmatprep.subr.mxu0 0.0
    %176 = vmatpush1.xpose.msra.mxu0 %v125
    %177 = vmatprep.subr.mxu0 0.0
    %178 = vmatpush1.xpose.msra.mxu0 %v128
    %179 = vmatprep.subr.mxu0 0.0
    %180 = vmatpush1.xpose.msra.mxu0 %v131
    %181 = vmatprep.subr.mxu0 0.0
    %182 = vmatpush1.xpose.msra.mxu0 0.0
    %183 = vmatprep.subr.mxu0 0.0
    %184 = vmatpush1.xpose.msra.mxu0 0.0
    %185 = vmatprep.subr.mxu0 0.0
    %186 = vmatpush1.xpose.msra.mxu0 0.0
    %187 = vmatprep.subr.mxu0 0.0
    %188 = vmatpush1.xpose.msra.mxu0 0.0
    %189 = vmatprep.subr.mxu0 0.0
    %190 = vmatpush1.xpose.msra.mxu0 0.0
    %191 = vmatprep.subr.mxu0 0.0
    %192 = vmatpush1.xpose.msra.mxu0 0.0
    %193 = vmatprep.subr.mxu0 0.0
    %194 = vmatpush1.xpose.msra.mxu0 0.0
    %195 = vmatprep.subr.mxu0 0.0
    %196 = vmatpush1.xpose.msra.mxu0 0.0
    %197 = vmatprep.mubr.f32.mxu0 0.0
    %198 = vmatmul.mubr.f32.gmra.mrb[0].mxu0 %v56
    %v199 = vpop.f32.mrb[0].mxu0
    %v200 = vadd.f32 0.0, %v199
    %v201 = vpop.f32.mrb[0].mxu0
    %v202 = vadd.f32 0.0, %v201
    %203 = vmatprep.mubr.f32.mxu0 0.0
    %204 = vmatmul.mubr.f32.gmra.mrb[0].mxu0 %v59
    %v205 = vpop.f32.mrb[0].mxu0
    %v206 = vadd.f32 0.0, %v205
    %v207 = vpop.f32.mrb[0].mxu0
    %v208 = vadd.f32 0.0, %v207
    %209 = vdwg.mxu0
    %v210 = vadd.f32 %v24, %v200
    %v211 = vadd.f32 %v25, %v202
    %v212 = vadd.f32 %v26, %v206
    %v213 = vadd.f32 %v27, %v208
    %214 = vst [vmem:[#allocation2] sm:$0xff] %v210
    %215 = vst.msk [vmem:[#allocation2 + $0x8] sm:$0xff] %vm54, %v211
    %216 = vst [vmem:[#allocation2 + $0x10] sm:$0xff] %v212
    %217 = vst.msk [vmem:[#allocation2 + $0x18] sm:$0xff] %vm54, %v213
    // Predicated region
    $region18: #{tpu_custom_call.1} parent=1 // pred_check
      %p218 = pneg %p15
    $region19: #{tpu_custom_call.1} parent=1 // pred_check_branch
      %220 = sbr.rel (%p218) target = $region21
    $region20: #{tpu_custom_call.1} parent=1 // pred_region
      %v221 = vld [vmem:[#allocation2] sm:$0xff]
      %v222 = vld [vmem:[#allocation2 + $0x8] sm:$0xff]
      %v223 = vld [vmem:[#allocation2 + $0x10] sm:$0xff]
      %v224 = vld [vmem:[#allocation2 + $0x18] sm:$0xff]
      %v225 = vld [vmem:[%s2] sm:$0x3]
      %v227 = vlaneseq
      %v228 = vshrl.u32 %v227, 7
      %v229 = vsub.s32 0, %v228
      %v230 = vrot.slane %v225, %v229
      %v231 = vlaneseq
      %v232 = vshrl.u32 %v231, 7
      %v233 = vsub.s32 1, %v232
      %v234 = vrot.slane %v225, %v233
      %v237 = vadd.f32 %v221, %v230
      %v238 = vadd.f32 %v222, %v234
      %v239 = vadd.f32 %v223, %v230
      %v240 = vadd.f32 %v224, %v234
      %241 = vst [vmem:[#allocation3] sm:$0xff] %v237
      %242 = vst.msk [vmem:[#allocation3 + $0x8] sm:$0xff] %vm54, %v238
      %243 = vst [vmem:[#allocation3 + $0x10] sm:$0xff] %v239
      %244 = vst.msk [vmem:[#allocation3 + $0x18] sm:$0xff] %vm54, %v240
    $region21: #{tpu_custom_call.1} parent=1 // pred_fallthru
      _
    // Predicated region
    $region22: #{tpu_custom_call.1} parent=1 // pred_check
      _
    $region23: #{tpu_custom_call.1} parent=1 // pred_check_branch
      %246 = sbr.rel (0) target = $region25
    $region24: #{tpu_custom_call.1} parent=1 // pred_region
      %s248 = ssub.s32 512, 512
      %249 = vsyncadd [#allocation4], %s248
      %s250 = sshll.u32 [#allocation3], 4
      %s251 = int_to_ptr.vmem [resolvable:$true] %s250
      %256 = dma.vmem_to_hbm [thread:$0]  %s251, 512, %s3, [#allocation4], 256, 256, 16
    $region25: #{tpu_custom_call.1} parent=1 // pred_fallthru
      _
    // Predicated region
    $region26: #{tpu_custom_call.1} parent=1 // pred_check
      _
    $region27: #{tpu_custom_call.1} parent=1 // pred_check_branch
      %258 = sbr.rel (0) target = $region29
    $region28: #{tpu_custom_call.1} parent=1 // pred_region
      %259 = dma.done [#allocation4], 512
    $region29: #{tpu_custom_call.1} parent=1 // pred_fallthru
      _
    %260 = vsyncpa [#allocation4], 1

</llo_original>
